<compile_context>
chip_gen: v7x
topology: tpu7x:2x2x1
jax: 0.10.0
libtpu: 0.0.40
codegen_flags: <defaults>
</compile_context>

<pallas_src>
import jax
import jax.numpy as jnp
from jax.experimental import pallas as pl
from jax.experimental.pallas import tpu as pltpu

ALPHA = 0.2        # LeakyReLU negative slope (the module's `alpha`)
_NEG_BIG = -1e30   # mask value baked into padded key columns of f2


def _round_up(v, m):
    return (v + m - 1) // m * m


def _gat_filter_kernel(f1_ref, f2_ref, x_ref, out_ref):
    """One grid step: attention rows [i*tq, (i+1)*tq) -> output columns [i*tq, ...).

    f1_ref : (tq, 1)   f32   h[q] . a1 for this query tile
    f2_ref : (1, Np)   f32   h[j] . a2 for all keys; padded cols = -1e30
    x_ref  : (Mp, Np)  bf16  padded x (grid-invariant, single-buffered)
    out_ref: (Mp, tq)  f32   output column block
    """
    # attention logits + LeakyReLU (padded key columns already masked via f2)
    e = f1_ref[...] + f2_ref[...]                      # (tq, Np)
    e = jnp.maximum(e, ALPHA * e)                      # LeakyReLU, 0 < alpha < 1

    # row softmax
    m = jnp.max(e, axis=1, keepdims=True)
    p = jnp.exp(e - m)
    attn = p * pl.reciprocal(jnp.sum(p, axis=1, keepdims=True), approx=True)

    # out[m, i*tq + q] = sum_j attn[q, j] * x[m, j]     (Mp, tq); bf16 MXU, f32 acc
    out_ref[...] = jax.lax.dot_general(
        x_ref[...], attn.astype(x_ref.dtype),
        dimension_numbers=(((1,), (1,)), ((), ())),
        preferred_element_type=jnp.float32)


def graph_attention_filter(embedding, x, adj, W, a):
    """Pallas equivalent of GraphAttentionFilter.forward.

    embedding: (N, in_features) f32
    x        : (M, N) f32
    adj      : unused (kept for signature parity; the reference forward ignores it)
    W        : (in_features, out_features) f32
    a        : (2*out_features, 1) f32
    returns  : (M, N) f32
    """
    del adj  # not used by the reference forward pass
    N = embedding.shape[0]
    M = x.shape[0]
    out_features = W.shape[1]

    # Hoist every projection: f12[:, 0] = h . a1, f12[:, 1] = h . a2 with
    # h = embedding @ W -- one (N, F_in) x (F_in, 2) matmul, h never materialized.
    wa = W.astype(jnp.float32) @ jnp.concatenate(
        [a[:out_features, :], a[out_features:, :]], axis=1).astype(jnp.float32)
    f12 = embedding.astype(jnp.float32) @ wa                             # (N, 2)

    # Tile sizes / padded shapes (lane/sublane friendly, lane-dense output).
    n128 = _round_up(N, 128)
    tq = 256 if (n128 % 256 == 0 and n128 >= 512) else 128
    n_p = _round_up(N, tq)
    m_p = _round_up(M, 8)

    f1_p = jnp.pad(f12[:, 0:1], ((0, n_p - N), (0, 0)))                  # (Np, 1)
    # Key projection as a lane-resident row with the pad mask baked in: padded
    # columns get -1e30 so their softmax weight underflows to exactly 0.
    f2_p = jnp.pad(f12[:, 1].reshape(1, N), ((0, 0), (0, n_p - N)),
                   constant_values=_NEG_BIG)                             # (1, Np)
    x_p = jnp.pad(x.astype(jnp.bfloat16), ((0, m_p - M), (0, n_p - N)))  # (Mp, Np)

    num_q_tiles = n_p // tq

    # VMEM budget: resident x (bf16, single-buffered) + f2 row + double-buffered
    # f1 / output blocks + the (tq, Np) softmax temporaries, with ~1.5x headroom.
    vmem_est = (m_p * n_p * 2          # x  (bf16, Buffered(1))
                + n_p * 4              # f2 row (Buffered(1))
                + 2 * tq * 4           # f1 blocks (double buffered)
                + 2 * m_p * tq * 4     # output blocks (double buffered)
                + 3 * tq * n_p * 4)    # e / p / attn temporaries
    vmem_limit = int(max(32 << 20, min(64 << 20, int(1.5 * vmem_est))))

    cost = pl.CostEstimate(
        flops=2 * m_p * n_p * n_p + 4 * n_p * n_p,
        transcendentals=n_p * n_p,
        bytes_accessed=(m_p * n_p * 2      # x in (bf16)
                        + n_p * 4          # f1
                        + n_p * 4          # f2
                        + m_p * n_p * 4))  # out

    out_p = pl.pallas_call(
        _gat_filter_kernel,
        out_shape=jax.ShapeDtypeStruct((m_p, n_p), jnp.float32),
        grid=(num_q_tiles,),
        in_specs=[
            pl.BlockSpec((tq, 1), lambda i: (i, 0)),                  # f1 per tile
            pl.BlockSpec((1, n_p), lambda i: (0, 0),
                         pipeline_mode=pl.Buffered(1)),               # f2 (invariant)
            pl.BlockSpec((m_p, n_p), lambda i: (0, 0),
                         pipeline_mode=pl.Buffered(1)),               # x  (invariant)
        ],
        out_specs=pl.BlockSpec((m_p, tq), lambda i: (0, i)),
        compiler_params=pltpu.CompilerParams(
            dimension_semantics=("parallel",),
            vmem_limit_bytes=vmem_limit),
        cost_estimate=cost,
    )(f1_p, f2_p, x_p)

    return out_p[:M, :N]


def _xavier_uniform(key, shape, gain):
    fan_in, fan_out = shape[0], shape[1]
    limit = gain * jnp.sqrt(6.0 / (fan_in + fan_out))
    return jax.random.uniform(key, shape, jnp.float32, minval=-limit, maxval=limit)


def _reference(embedding, x, W, a, alpha=ALPHA):
    """Pure-JAX reference mirroring the PyTorch forward (all f32)."""
    h = embedding @ W
    N = h.shape[0]
    out_f = W.shape[1]
    a_input = jnp.concatenate(
        [jnp.repeat(h, N, axis=0), jnp.tile(h, (N, 1))], axis=1
    ).reshape(N, N, 2 * out_f)
    e = jnp.squeeze(a_input @ a, axis=2)
    e = jnp.where(e > 0, e, alpha * e)
    attn = jax.nn.softmax(e, axis=1)
    return (attn @ x.T).T


if __name__ == "__main__":
    key = jax.random.PRNGKey(0)
    k_emb, k_x, k_w, k_a = jax.random.split(key, 4)

    N = 16            # number of graph nodes
    in_features = 32
    out_features = 32
    M = 16            # feature dim of x (x is (M, N) as in the PyTorch call)

    embedding = jax.random.normal(k_emb, (N, in_features), jnp.float32)
    x = jax.random.normal(k_x, (M, N), jnp.float32)
    adj = jnp.ones((N, N), jnp.float32)  # unused in forward, passed for parity

    W = _xavier_uniform(k_w, (in_features, out_features), gain=1.414)
    a = _xavier_uniform(k_a, (2 * out_features, 1), gain=1.414)

    out = graph_attention_filter(embedding, x, adj, W, a)
    out = jax.block_until_ready(out)

    ref = _reference(embedding, x, W, a)
    assert out.shape == (M, N)
    # Tolerance accounts for the bf16 inputs to the final MXU contraction and
    # the approximate (EUP) softmax reciprocal, both per the perf guidance;
    # accumulation stays in f32 so the error is a few 1e-3 absolute.
    assert jnp.allclose(out, ref, atol=2e-2, rtol=2e-2), "mismatch vs reference"

    print("KERNEL_OK")
</pallas_src>

<mosaic_0001>
module attributes {stable_mosaic.version = 11 : i64} {
  func.func @_gat_filter_kernel(%arg0: i32, %arg1: memref<128x1xf32, #tpu.memory_space<vmem>>, %arg2: memref<1x128xf32, #tpu.memory_space<vmem>>, %arg3: memref<16x128xbf16, #tpu.memory_space<vmem>>, %arg4: memref<16x128xf32, #tpu.memory_space<vmem>>) attributes {dimension_semantics = [#tpu.dimension_semantics<parallel>], iteration_bounds = array<i64: 1>, scalar_prefetch = 0 : i64, scratch_operands = 0 : i64, tpu.core_type = #tpu.core_type<tc>, window_params = [{transform_indices = @transform_0, window_bounds = array<i64: 128, 1>}, {pipeline_mode = #tpu.pipeline_mode<synchronous>, transform_indices = @transform_1, window_bounds = array<i64: 1, 128>}, {pipeline_mode = #tpu.pipeline_mode<synchronous>, transform_indices = @transform_2, window_bounds = array<i64: 16, 128>}, {transform_indices = @transform_3, window_bounds = array<i64: 16, 128>}]} {
    %c0 = arith.constant 0 : index
    %c0_0 = arith.constant 0 : index
    %0 = vector.load %arg1[%c0, %c0_0] : memref<128x1xf32, #tpu.memory_space<vmem>>, vector<128x1xf32>
    %c0_1 = arith.constant 0 : index
    %c0_2 = arith.constant 0 : index
    %1 = vector.load %arg2[%c0_1, %c0_2] : memref<1x128xf32, #tpu.memory_space<vmem>>, vector<1x128xf32>
    %2 = vector.broadcast %0 : vector<128x1xf32> to vector<128x128xf32>
    %3 = vector.broadcast %1 : vector<1x128xf32> to vector<128x128xf32>
    %4 = arith.addf %2, %3 : vector<128x128xf32>
    %cst = arith.constant 2.000000e-01 : f32
    %5 = vector.broadcast %cst : f32 to vector<128x128xf32>
    %6 = arith.mulf %5, %4 : vector<128x128xf32>
    %7 = arith.maximumf %4, %6 : vector<128x128xf32>
    %cst_3 = arith.constant dense<0xFF800000> : vector<128xf32>
    %8 = vector.multi_reduction <maximumf>, %7, %cst_3 [1] : vector<128x128xf32> to vector<128xf32>
    %9 = vector.shape_cast %8 : vector<128xf32> to vector<128x1xf32>
    %10 = vector.broadcast %9 : vector<128x1xf32> to vector<128x128xf32>
    %11 = arith.subf %7, %10 : vector<128x128xf32>
    %12 = math.exp %11 : vector<128x128xf32>
    %cst_4 = arith.constant dense<0.000000e+00> : vector<128xf32>
    %13 = vector.multi_reduction <add>, %12, %cst_4 [1] : vector<128x128xf32> to vector<128xf32>
    %14 = vector.shape_cast %13 : vector<128xf32> to vector<128x1xf32>
    %15 = tpu.reciprocal %14 {approx = true} : vector<128x1xf32> -> vector<128x1xf32>
    %16 = vector.broadcast %15 : vector<128x1xf32> to vector<128x128xf32>
    %17 = arith.mulf %12, %16 : vector<128x128xf32>
    %c0_5 = arith.constant 0 : index
    %c0_6 = arith.constant 0 : index
    %18 = vector.load %arg3[%c0_5, %c0_6] : memref<16x128xbf16, #tpu.memory_space<vmem>>, vector<16x128xbf16>
    %19 = arith.truncf %17 : vector<128x128xf32> to vector<128x128xbf16>
    %cst_7 = arith.constant dense<0.000000e+00> : vector<16x128xf32>
    %20 = tpu.matmul %18, %19, %cst_7 {dimension_numbers = #tpu.dot_dimension_numbers<[1], [1], [0], [0], [0, 0, 1, 0], [], []>} : vector<16x128xbf16>, vector<128x128xbf16>, vector<16x128xf32> -> vector<16x128xf32>
    %c0_8 = arith.constant 0 : index
    %c0_9 = arith.constant 0 : index
    %21 = vector.load %arg4[%c0_8, %c0_9] : memref<16x128xf32, #tpu.memory_space<vmem>>, vector<16x128xf32>
    tpu.vector_store %arg4[%c0_8, %c0_9], %20 {strides = array<i32>} : memref<16x128xf32, #tpu.memory_space<vmem>>, vector<16x128xf32>,
    return
  }
  func.func @transform_0(%arg0: i32) -> (i32, i32) {
    %c0_i32 = arith.constant 0 : i32
    %c0_i32_0 = arith.constant 0 : i32
    return %arg0, %c0_i32 : i32, i32
  }
  func.func @transform_1(%arg0: i32) -> (i32, i32) {
    %c0_i32 = arith.constant 0 : i32
    %c0_i32_0 = arith.constant 0 : i32
    %c0_i32_1 = arith.constant 0 : i32
    return %c0_i32, %c0_i32_0 : i32, i32
  }
  func.func @transform_2(%arg0: i32) -> (i32, i32) {
    %c0_i32 = arith.constant 0 : i32
    %c0_i32_0 = arith.constant 0 : i32
    %c0_i32_1 = arith.constant 0 : i32
    return %c0_i32, %c0_i32_0 : i32, i32
  }
  func.func @transform_3(%arg0: i32) -> (i32, i32) {
    %c0_i32 = arith.constant 0 : i32
    %c0_i32_0 = arith.constant 0 : i32
    return %c0_i32, %arg0 : i32, i32
  }
}

</mosaic_0001>

<llo_original>
// kernel: tpu_custom_call.1
$region0: #{tpu_custom_call.1}
  #allocation0 [shape = 'u32[]', space=smem, size = 0x4, offset = 0x4, fixed_abs, tag = 'smem constant byte address 0x4 - core index']
  #allocation1 [shape = 'u32[144,128]{1,0:T(1,128)}', space=vmem, size = 0x12000, scoped, tag = 'internal scratch']
  %s0 = inlined_call_operand.vmem [shape: f32[128,1], index: 0, kind: input, shape index: {}]
  %s1 = inlined_call_operand.vmem [shape: f32[1,128], index: 1, kind: input, shape index: {}]
  %s2 = inlined_call_operand.vmem [shape: bf16[16,128], index: 2, kind: input, shape index: {}]
  %s3 = inlined_call_operand.hbm [shape: f32[16,128], index: 3, kind: output, shape index: {}]
  %s4 = sld [smem:[#allocation0]]
  $region22: #{tpu_custom_call.1} parent=0
    _
  %s6 = ssub.s32 1, %s4
  %s7 = scalar_select 0, %s6, %s4
  $region1: #{tpu_custom_call.1} parent=0
    #allocation2 [shape = 'u8[8192]{0}', space=vmem, size = 0x2000, scoped, tag = 'output window, operand 0, single buffered']
    #allocation3 [shape = 's32[1]{0}', space=sflag, size = 0x4, scoped, tag = 'scoped memory for tpu_custom_call.1']
    %8 = vsyncpa [#allocation3], 0
    // Predicated region
    $region2: #{tpu_custom_call.1} parent=1 // pred_check
      _
    $region3: #{tpu_custom_call.1} parent=1 // pred_check_branch
      %10 = sbr.rel (0) target = $region5
    $region4: #{tpu_custom_call.1} parent=1 // pred_region
      _
    $region5: #{tpu_custom_call.1} parent=1 // pred_fallthru
      _
    // Predicated region
    $region6: #{tpu_custom_call.1} parent=1 // pred_check
      _
    $region7: #{tpu_custom_call.1} parent=1 // pred_check_branch
      %12 = sbr.rel (0) target = $region9
    $region8: #{tpu_custom_call.1} parent=1 // pred_region
      _
    $region9: #{tpu_custom_call.1} parent=1 // pred_fallthru
      _
    // Predicated region
    $region10: #{tpu_custom_call.1} parent=1 // pred_check
      _
    $region11: #{tpu_custom_call.1} parent=1 // pred_check_branch
      %14 = sbr.rel (0) target = $region13
    $region12: #{tpu_custom_call.1} parent=1 // pred_region
      _
    $region13: #{tpu_custom_call.1} parent=1 // pred_fallthru
      _
    %v16 = vld [vmem:[%s0] sm:$0xff]
    %v17 = vld [vmem:[%s0 + $0x8] sm:$0xff]
    %v18 = vld [vmem:[%s0 + $0x10] sm:$0xff]
    %v19 = vld [vmem:[%s0 + $0x18] sm:$0xff]
    %v20 = vld [vmem:[%s0 + $0x20] sm:$0xff]
    %v21 = vld [vmem:[%s0 + $0x28] sm:$0xff]
    %v22 = vld [vmem:[%s0 + $0x30] sm:$0xff]
    %v23 = vld [vmem:[%s0 + $0x38] sm:$0xff]
    %v24 = vld [vmem:[%s0 + $0x40] sm:$0xff]
    %v25 = vld [vmem:[%s0 + $0x48] sm:$0xff]
    %v26 = vld [vmem:[%s0 + $0x50] sm:$0xff]
    %v27 = vld [vmem:[%s0 + $0x58] sm:$0xff]
    %v28 = vld [vmem:[%s0 + $0x60] sm:$0xff]
    %v29 = vld [vmem:[%s0 + $0x68] sm:$0xff]
    %v30 = vld [vmem:[%s0 + $0x70] sm:$0xff]
    %v31 = vld [vmem:[%s0 + $0x78] sm:$0xff]
    %v32 = vld [vmem:[%s1] sm:$0x1]
    %34 = vset.pattern.permute.xlu0 0
    %35 = vperm.xlu0 %34, %v16
    %v36 = vpop.permute.xlu0 %35
    %39 = vset.pattern.permute.xlu0 0
    %40 = vperm.xlu0 %39, %v17
    %v41 = vpop.permute.xlu0 %40
    %44 = vset.pattern.permute.xlu0 0
    %45 = vperm.xlu0 %44, %v18
    %v46 = vpop.permute.xlu0 %45
    %49 = vset.pattern.permute.xlu0 0
    %50 = vperm.xlu0 %49, %v19
    %v51 = vpop.permute.xlu0 %50
    %54 = vset.pattern.permute.xlu0 0
    %55 = vperm.xlu0 %54, %v20
    %v56 = vpop.permute.xlu0 %55
    %59 = vset.pattern.permute.xlu0 0
    %60 = vperm.xlu0 %59, %v21
    %v61 = vpop.permute.xlu0 %60
    %64 = vset.pattern.permute.xlu0 0
    %65 = vperm.xlu0 %64, %v22
    %v66 = vpop.permute.xlu0 %65
    %69 = vset.pattern.permute.xlu0 0
    %70 = vperm.xlu0 %69, %v23
    %v71 = vpop.permute.xlu0 %70
    %74 = vset.pattern.permute.xlu0 0
    %75 = vperm.xlu0 %74, %v24
    %v76 = vpop.permute.xlu0 %75
    %79 = vset.pattern.permute.xlu0 0
    %80 = vperm.xlu0 %79, %v25
    %v81 = vpop.permute.xlu0 %80
    %84 = vset.pattern.permute.xlu0 0
    %85 = vperm.xlu0 %84, %v26
    %v86 = vpop.permute.xlu0 %85
    %89 = vset.pattern.permute.xlu0 0
    %90 = vperm.xlu0 %89, %v27
    %v91 = vpop.permute.xlu0 %90
    %94 = vset.pattern.permute.xlu0 0
    %95 = vperm.xlu0 %94, %v28
    %v96 = vpop.permute.xlu0 %95
    %99 = vset.pattern.permute.xlu0 0
    %100 = vperm.xlu0 %99, %v29
    %v101 = vpop.permute.xlu0 %100
    %104 = vset.pattern.permute.xlu0 0
    %105 = vperm.xlu0 %104, %v30
    %v106 = vpop.permute.xlu0 %105
    %109 = vset.pattern.permute.xlu0 0
    %110 = vperm.xlu0 %109, %v31
    %v111 = vpop.permute.xlu0 %110
    %v114 = vlaneseq
    %v115 = vshrl.u32 %v114, 7
    %v116 = vsub.s32 0, %v115
    %v117 = vrot.slane %v32, %v116
    %v119 = vadd.f32 %v36, %v117
    %v120 = vadd.f32 %v41, %v117
    %v121 = vadd.f32 %v46, %v117
    %v122 = vadd.f32 %v51, %v117
    %v123 = vadd.f32 %v56, %v117
    %v124 = vadd.f32 %v61, %v117
    %v125 = vadd.f32 %v66, %v117
    %v126 = vadd.f32 %v71, %v117
    %v127 = vadd.f32 %v76, %v117
    %v128 = vadd.f32 %v81, %v117
    %v129 = vadd.f32 %v86, %v117
    %v130 = vadd.f32 %v91, %v117
    %v131 = vadd.f32 %v96, %v117
    %v132 = vadd.f32 %v101, %v117
    %v133 = vadd.f32 %v106, %v117
    %v134 = vadd.f32 %v111, %v117
    %v135 = vmul.f32 %v119, 0.2
    %v136 = vmul.f32 %v120, 0.2
    %v137 = vmul.f32 %v121, 0.2
    %v138 = vmul.f32 %v122, 0.2
    %v139 = vmul.f32 %v123, 0.2
    %v140 = vmul.f32 %v124, 0.2
    %v141 = vmul.f32 %v125, 0.2
    %v142 = vmul.f32 %v126, 0.2
    %v143 = vmul.f32 %v127, 0.2
    %v144 = vmul.f32 %v128, 0.2
    %v145 = vmul.f32 %v129, 0.2
    %v146 = vmul.f32 %v130, 0.2
    %v147 = vmul.f32 %v131, 0.2
    %v148 = vmul.f32 %v132, 0.2
    %v149 = vmul.f32 %v133, 0.2
    %v150 = vmul.f32 %v134, 0.2
    %v151 = vmax.f32 %v119, %v135
    %v152 = vmax.f32 %v120, %v136
    %v153 = vmax.f32 %v121, %v137
    %v154 = vmax.f32 %v122, %v138
    %v155 = vmax.f32 %v123, %v139
    %v156 = vmax.f32 %v124, %v140
    %v157 = vmax.f32 %v125, %v141
    %v158 = vmax.f32 %v126, %v142
    %v159 = vmax.f32 %v127, %v143
    %v160 = vmax.f32 %v128, %v144
    %v161 = vmax.f32 %v129, %v145
    %v162 = vmax.f32 %v130, %v146
    %v163 = vmax.f32 %v131, %v147
    %v164 = vmax.f32 %v132, %v148
    %v165 = vmax.f32 %v133, %v149
    %v166 = vmax.f32 %v134, %v150
    %167 = vmax.xlane.f32.xlu0 %v151
    %v168 = vpop.xlane.xlu0 %167
    %169 = vmax.xlane.f32.xlu0 %v152
    %v170 = vpop.xlane.xlu0 %169
    %171 = vmax.xlane.f32.xlu0 %v153
    %v172 = vpop.xlane.xlu0 %171
    %173 = vmax.xlane.f32.xlu0 %v154
    %v174 = vpop.xlane.xlu0 %173
    %175 = vmax.xlane.f32.xlu0 %v155
    %v176 = vpop.xlane.xlu0 %175
    %177 = vmax.xlane.f32.xlu0 %v156
    %v178 = vpop.xlane.xlu0 %177
    %179 = vmax.xlane.f32.xlu0 %v157
    %v180 = vpop.xlane.xlu0 %179
    %181 = vmax.xlane.f32.xlu0 %v158
    %v182 = vpop.xlane.xlu0 %181
    %183 = vmax.xlane.f32.xlu0 %v159
    %v184 = vpop.xlane.xlu0 %183
    %185 = vmax.xlane.f32.xlu0 %v160
    %v186 = vpop.xlane.xlu0 %185
    %187 = vmax.xlane.f32.xlu0 %v161
    %v188 = vpop.xlane.xlu0 %187
    %189 = vmax.xlane.f32.xlu0 %v162
    %v190 = vpop.xlane.xlu0 %189
    %191 = vmax.xlane.f32.xlu0 %v163
    %v192 = vpop.xlane.xlu0 %191
    %193 = vmax.xlane.f32.xlu0 %v164
    %v194 = vpop.xlane.xlu0 %193
    %195 = vmax.xlane.f32.xlu0 %v165
    %v196 = vpop.xlane.xlu0 %195
    %197 = vmax.xlane.f32.xlu0 %v166
    %v198 = vpop.xlane.xlu0 %197
    %v199 = vsub.f32 %v151, %v168
    %v200 = vsub.f32 %v152, %v170
    %v201 = vsub.f32 %v153, %v172
    %v202 = vsub.f32 %v154, %v174
    %v203 = vsub.f32 %v155, %v176
    %v204 = vsub.f32 %v156, %v178
    %v205 = vsub.f32 %v157, %v180
    %v206 = vsub.f32 %v158, %v182
    %v207 = vsub.f32 %v159, %v184
    %v208 = vsub.f32 %v160, %v186
    %v209 = vsub.f32 %v161, %v188
    %v210 = vsub.f32 %v162, %v190
    %v211 = vsub.f32 %v163, %v192
    %v212 = vsub.f32 %v164, %v194
    %v213 = vsub.f32 %v165, %v196
    %v214 = vsub.f32 %v166, %v198
    %v215 = vmul.f32 %v199, 1.442695
    %v216 = vpow.pop %v215
    %v217 = vmul.f32 %v200, 1.442695
    %v218 = vpow.pop %v217
    %v219 = vmul.f32 %v201, 1.442695
    %v220 = vpow.pop %v219
    %v221 = vmul.f32 %v202, 1.442695
    %v222 = vpow.pop %v221
    %v223 = vmul.f32 %v203, 1.442695
    %v224 = vpow.pop %v223
    %v225 = vmul.f32 %v204, 1.442695
    %v226 = vpow.pop %v225
    %v227 = vmul.f32 %v205, 1.442695
    %v228 = vpow.pop %v227
    %v229 = vmul.f32 %v206, 1.442695
    %v230 = vpow.pop %v229
    %v231 = vmul.f32 %v207, 1.442695
    %v232 = vpow.pop %v231
    %v233 = vmul.f32 %v208, 1.442695
    %v234 = vpow.pop %v233
    %v235 = vmul.f32 %v209, 1.442695
    %v236 = vpow.pop %v235
    %v237 = vmul.f32 %v210, 1.442695
    %v238 = vpow.pop %v237
    %v239 = vmul.f32 %v211, 1.442695
    %v240 = vpow.pop %v239
    %v241 = vmul.f32 %v212, 1.442695
    %v242 = vpow.pop %v241
    %v243 = vmul.f32 %v213, 1.442695
    %v244 = vpow.pop %v243
    %v245 = vmul.f32 %v214, 1.442695
    %v246 = vpow.pop %v245
    %247 = vadd.xlane.f32.xlu0 %v216
    %v248 = vpop.xlane.xlu0 %247
    %249 = vadd.xlane.f32.xlu0 %v218
    %v250 = vpop.xlane.xlu0 %249
    %251 = vadd.xlane.f32.xlu0 %v220
    %v252 = vpop.xlane.xlu0 %251
    %253 = vadd.xlane.f32.xlu0 %v222
    %v254 = vpop.xlane.xlu0 %253
    %255 = vadd.xlane.f32.xlu0 %v224
    %v256 = vpop.xlane.xlu0 %255
    %257 = vadd.xlane.f32.xlu0 %v226
    %v258 = vpop.xlane.xlu0 %257
    %259 = vadd.xlane.f32.xlu0 %v228
    %v260 = vpop.xlane.xlu0 %259
    %261 = vadd.xlane.f32.xlu0 %v230
    %v262 = vpop.xlane.xlu0 %261
    %263 = vadd.xlane.f32.xlu0 %v232
    %v264 = vpop.xlane.xlu0 %263
    %265 = vadd.xlane.f32.xlu0 %v234
    %v266 = vpop.xlane.xlu0 %265
    %267 = vadd.xlane.f32.xlu0 %v236
    %v268 = vpop.xlane.xlu0 %267
    %269 = vadd.xlane.f32.xlu0 %v238
    %v270 = vpop.xlane.xlu0 %269
    %271 = vadd.xlane.f32.xlu0 %v240
    %v272 = vpop.xlane.xlu0 %271
    %273 = vadd.xlane.f32.xlu0 %v242
    %v274 = vpop.xlane.xlu0 %273
    %275 = vadd.xlane.f32.xlu0 %v244
    %v276 = vpop.xlane.xlu0 %275
    %277 = vadd.xlane.f32.xlu0 %v246
    %v278 = vpop.xlane.xlu0 %277
    %v279 = vrcp.pop %v248
    %v280 = vrcp.pop %v250
    %v281 = vrcp.pop %v252
    %v282 = vrcp.pop %v254
    %v283 = vrcp.pop %v256
    %v284 = vrcp.pop %v258
    %v285 = vrcp.pop %v260
    %v286 = vrcp.pop %v262
    %v287 = vrcp.pop %v264
    %v288 = vrcp.pop %v266
    %v289 = vrcp.pop %v268
    %v290 = vrcp.pop %v270
    %v291 = vrcp.pop %v272
    %v292 = vrcp.pop %v274
    %v293 = vrcp.pop %v276
    %v294 = vrcp.pop %v278
    %v295 = vmul.f32 %v216, %v279
    %v296 = vmul.f32 %v218, %v280
    %v297 = vmul.f32 %v220, %v281
    %v298 = vmul.f32 %v222, %v282
    %v299 = vmul.f32 %v224, %v283
    %v300 = vmul.f32 %v226, %v284
    %v301 = vmul.f32 %v228, %v285
    %v302 = vmul.f32 %v230, %v286
    %v303 = vmul.f32 %v232, %v287
    %v304 = vmul.f32 %v234, %v288
    %v305 = vmul.f32 %v236, %v289
    %v306 = vmul.f32 %v238, %v290
    %v307 = vmul.f32 %v240, %v291
    %v308 = vmul.f32 %v242, %v292
    %v309 = vmul.f32 %v244, %v293
    %v310 = vmul.f32 %v246, %v294
    %v311 = vld [vmem:[%s2] sm:$0xf]
    %v312 = vld [vmem:[%s2 + $0x4] sm:$0xf]
    %v313 = vpack.c.bf16 %v296, %v295
    %v314 = vpack.c.bf16 %v298, %v297
    %v315 = vpack.c.bf16 %v300, %v299
    %v316 = vpack.c.bf16 %v302, %v301
    %v317 = vpack.c.bf16 %v304, %v303
    %v318 = vpack.c.bf16 %v306, %v305
    %v319 = vpack.c.bf16 %v308, %v307
    %v320 = vpack.c.bf16 %v310, %v309
    %v323 = vunpack.c.l.b16 %v311
    %v324 = vunpack.c.l.b16 %v312
    %v325 = vpack.c.b16 %v324, %v323
    %327 = vmatprep.subr.bf16.mxu0 0
    %328 = vmatpush1.bf16.xpose.msra.mxu0 %v313
    %329 = vmatprep.subr.bf16.mxu0 0
    %330 = vmatpush1.bf16.xpose.msra.mxu0 %v314
    %331 = vmatprep.subr.bf16.mxu0 0
    %332 = vmatpush1.bf16.xpose.msra.mxu0 %v315
    %333 = vmatprep.subr.bf16.mxu0 0
    %334 = vmatpush1.bf16.xpose.msra.mxu0 %v316
    %335 = vmatprep.subr.bf16.mxu0 0
    %336 = vmatpush1.bf16.xpose.msra.mxu0 %v317
    %337 = vmatprep.subr.bf16.mxu0 0
    %338 = vmatpush1.bf16.xpose.msra.mxu0 %v318
    %339 = vmatprep.subr.bf16.mxu0 0
    %340 = vmatpush1.bf16.xpose.msra.mxu0 %v319
    %341 = vmatprep.subr.bf16.mxu0 0
    %342 = vmatpush1.bf16.xpose.msra.mxu0 %v320
    %343 = vmatprep.subr.bf16.mxu0 0
    %344 = vmatpush1.bf16.xpose.msra.mxu0 0
    %345 = vmatprep.subr.bf16.mxu0 0
    %346 = vmatpush1.bf16.xpose.msra.mxu0 0
    %347 = vmatprep.subr.bf16.mxu0 0
    %348 = vmatpush1.bf16.xpose.msra.mxu0 0
    %349 = vmatprep.subr.bf16.mxu0 0
    %350 = vmatpush1.bf16.xpose.msra.mxu0 0
    %351 = vmatprep.subr.bf16.mxu0 0
    %352 = vmatpush1.bf16.xpose.msra.mxu0 0
    %353 = vmatprep.subr.bf16.mxu0 0
    %354 = vmatpush1.bf16.xpose.msra.mxu0 0
    %355 = vmatprep.subr.bf16.mxu0 0
    %356 = vmatpush1.bf16.xpose.msra.mxu0 0
    %357 = vmatprep.subr.bf16.mxu0 0
    %358 = vmatpush1.bf16.xpose.msra.mxu0 0
    %359 = vmatprep.mubr.bf16.mxu0 0
    %360 = vmatmul.mubr.bf16.gmra.mrb[0].mxu0 %v325
    %v361 = vpop.f32.mrb[0].mxu0
    %v362 = vadd.f32 0.0, %v361
    %v363 = vpop.f32.mrb[0].mxu0
    %v364 = vpop.f32.mrb[0].mxu0
    %v365 = vadd.f32 0.0, %v364
    %v366 = vpop.f32.mrb[0].mxu0
    %367 = vdwg.mxu0
    %368 = vst [vmem:[#allocation2] sm:$0xff] %v362
    %369 = vst [vmem:[#allocation2 + $0x8] sm:$0xff] %v365
    // Predicated region
    $region14: #{tpu_custom_call.1} parent=1 // pred_check
      _
    $region15: #{tpu_custom_call.1} parent=1 // pred_check_branch
      %371 = sbr.rel (0) target = $region17
    $region16: #{tpu_custom_call.1} parent=1 // pred_region
      %s373 = ssub.s32 256, 256
      %374 = vsyncadd [#allocation3], %s373
      %s375 = sshll.u32 [#allocation2], 4
      %s376 = int_to_ptr.vmem [resolvable:$true] %s375
      %381 = dma.vmem_to_hbm [thread:$0]  %s376, 256, %s3, [#allocation3], 128, 128, 8
    $region17: #{tpu_custom_call.1} parent=1 // pred_fallthru
      _
    // Predicated region
    $region18: #{tpu_custom_call.1} parent=1 // pred_check
      _
    $region19: #{tpu_custom_call.1} parent=1 // pred_check_branch
      %383 = sbr.rel (0) target = $region21
    $region20: #{tpu_custom_call.1} parent=1 // pred_region
      %384 = dma.done [#allocation3], 256
    $region21: #{tpu_custom_call.1} parent=1 // pred_fallthru
      _
    %385 = vsyncpa [#allocation3], 1

</llo_original>
